<compile_context>
chip_gen: v6e
topology: v6e:2x2x1
jax: 0.10.0
libtpu: 0.0.40
codegen_flags: <defaults>
</compile_context>

<pallas_src>
import functools

import jax
import jax.numpy as jnp
from jax.experimental import pallas as pl
from jax.experimental.pallas import tpu as pltpu


# Per-buffered-tile byte budgets (in the *input* dtype):
#   stats pass : only x is streamed (2 buffers)        -> larger tiles.
#   affine pass: x in + y out are streamed (4 buffers) -> smaller tiles.
_STATS_TILE_BYTES = 4 * 1024 * 1024
_AFFINE_TILE_BYTES = 3 * 1024 * 1024
_VMEM_LIMIT_BYTES = 32 * 1024 * 1024  # explicit scoped-VMEM limit, all generations


def _pick_tile(total, cap, multiple=None):
    """Largest divisor of `total` that is <= cap, preferring multiples of `multiple`."""
    cap = max(1, min(total, cap))
    if multiple is not None and cap >= multiple:
        d = (cap // multiple) * multiple
        while d >= multiple:
            if total % d == 0:
                return d
            d -= multiple
    d = cap
    while d > 1:
        if total % d == 0:
            return d
        d -= 1
    return 1


def _choose_tiles(rows, C, HW, itemsize, tile_bytes, hw_cap=None):
    """Pick (tile_rows, tile_hw): grow HW tile toward full contiguous rows first."""
    hw_budget = max(1, tile_bytes // (C * itemsize))
    if hw_cap is not None:
        hw_budget = min(hw_budget, hw_cap)
    if HW <= hw_budget:
        tile_hw = HW                                   # full contiguous row DMA
    else:
        tile_hw = _pick_tile(HW, hw_budget, multiple=128)
    row_budget = max(1, tile_bytes // (C * tile_hw * itemsize))
    tile_rows = _pick_tile(rows, row_budget)
    return tile_rows, tile_hw


# ---------------------------------------------------------------------------
# Pass 1: per-channel stats + fused scale/shift epilogue.
#   grid = (half, batch-tile, hw-tile)
#   x_ref:     (tile_bs, C, tile_hw)        streamed
#   gamma/beta (1, C, 1)                    per-half affine params
#   outputs    scale/shift/mean/std (1,C,1) written once per half (epilogue)
#   scratch    sum_acc / sq_acc (C, 128)    lane-dense partial accumulators
# ---------------------------------------------------------------------------
def _stats_kernel(x_ref, gamma_ref, beta_ref,
                  scale_ref, shift_ref, mean_ref, std_ref,
                  sum_acc, sq_acc,
                  *, n_elems, lane_groups, rem):
    b = pl.program_id(1)
    t = pl.program_id(2)

    @pl.when(jnp.logical_and(b == 0, t == 0))
    def _():
        sum_acc[...] = jnp.zeros_like(sum_acc)
        sq_acc[...] = jnp.zeros_like(sq_acc)

    # Lane-dense accumulation: fold tile_hw into 128-lane groups with pure
    # elementwise (VALU) adds; no per-tile cross-lane reduce, and 128-way
    # partial sums improve f32 accuracy of the E[x^2]-E[x]^2 variance.
    for g in range(lane_groups):
        blk = x_ref[:, :, pl.ds(g * 128, 128)].astype(jnp.float32)  # (bs_t, C, 128)
        sum_acc[...] += jnp.sum(blk, axis=0)
        sq_acc[...] += jnp.sum(blk * blk, axis=0)
    if rem:
        blk = x_ref[:, :, pl.ds(lane_groups * 128, rem)].astype(jnp.float32)
        sum_acc[:, :rem] += jnp.sum(blk, axis=0)
        sq_acc[:, :rem] += jnp.sum(blk * blk, axis=0)

    # Epilogue (once per half): single XLU lane-reduce + tiny per-channel math.
    @pl.when(jnp.logical_and(b == pl.num_programs(1) - 1,
                             t == pl.num_programs(2) - 1))
    def _():
        s = jnp.sum(sum_acc[...], axis=-1, keepdims=True)[None]     # (1, C, 1)
        ss = jnp.sum(sq_acc[...], axis=-1, keepdims=True)[None]     # (1, C, 1)
        mean = s / n_elems
        # Unbiased variance, no eps (matches the PyTorch reference forward);
        # clamp tiny negative rounding noise so sqrt never NaNs.
        var = jnp.maximum(ss - n_elems * mean * mean, 0.0) / (n_elems - 1.0)
        std = jnp.sqrt(var)
        scale = gamma_ref[...] / std
        shift = beta_ref[...] - mean * scale
        mean_ref[...] = mean
        std_ref[...] = std
        scale_ref[...] = scale
        shift_ref[...] = shift


# ---------------------------------------------------------------------------
# Pass 2 (train): y = x * scale + shift with precomputed per-channel scale/shift.
# ---------------------------------------------------------------------------
def _affine_kernel(x_ref, scale_ref, shift_ref, o_ref):
    x = x_ref[...].astype(jnp.float32)
    o_ref[...] = (x * scale_ref[...] + shift_ref[...]).astype(o_ref.dtype)


# ---------------------------------------------------------------------------
# Eval: fused (x - mean)/std * gamma + beta; per-channel scale/shift computed
# in-kernel (tiny (1,C,1) math per step) so there are no pre-kernel XLA ops.
# ---------------------------------------------------------------------------
def _eval_affine_kernel(x_ref, mean_ref, std_ref, gamma_ref, beta_ref, o_ref):
    scale = gamma_ref[...] / std_ref[...]
    shift = beta_ref[...] - mean_ref[...] * scale
    x = x_ref[...].astype(jnp.float32)
    o_ref[...] = (x * scale + shift).astype(o_ref.dtype)


# ---------------------------------------------------------------------------
# Training-mode forward: per-half batchnorm stats + affine + [clean, adv] swap.
# ---------------------------------------------------------------------------
def dualbn_train(x, gamma_adv, beta_adv, gamma_clean, beta_clean,
                 *, stats_tile_bytes=_STATS_TILE_BYTES,
                 affine_tile_bytes=_AFFINE_TILE_BYTES, hw_cap=None):
    """x: (2*bs, C, H, W), first half adversarial, second half clean.

    Returns (out, (mean_adv, std_adv, mean_clean, std_clean)); out is
    cat([clean_normalized, adv_normalized]) (the swap), all NCHW.
    """
    N, C, H, W = x.shape
    bs = N // 2
    HW = H * W
    xr = x.reshape(N, C, HW)
    itemsize = jnp.dtype(x.dtype).itemsize  # real dtype size (bf16 -> bigger tiles)

    # ---- pass 1: streamed per-channel stats, fused scale/shift epilogue ----
    s_bs, s_hw = _choose_tiles(bs, C, HW, itemsize, stats_tile_bytes, hw_cap)
    sn_bs, sn_hw = bs // s_bs, HW // s_hw
    lane_groups, rem = divmod(s_hw, 128)

    gamma = jnp.stack([gamma_adv.reshape(C, 1),
                       gamma_clean.reshape(C, 1)]).astype(jnp.float32)   # (2, C, 1)
    beta = jnp.stack([beta_adv.reshape(C, 1),
                      beta_clean.reshape(C, 1)]).astype(jnp.float32)     # (2, C, 1)

    stats_kern = functools.partial(_stats_kernel, n_elems=float(bs * HW),
                                   lane_groups=lane_groups, rem=rem)
    param_spec = pl.BlockSpec((1, C, 1), lambda i, b, t: (i, 0, 0))
    scale, shift, mean, std = pl.pallas_call(
        stats_kern,
        out_shape=tuple(jax.ShapeDtypeStruct((2, C, 1), jnp.float32)
                        for _ in range(4)),
        grid_spec=pltpu.PrefetchScalarGridSpec(
            num_scalar_prefetch=0,
            grid=(2, sn_bs, sn_hw),
            in_specs=[
                pl.BlockSpec((s_bs, C, s_hw),
                             lambda i, b, t: (i * sn_bs + b, 0, t)),
                param_spec,   # gamma
                param_spec,   # beta
            ],
            out_specs=(param_spec, param_spec, param_spec, param_spec),
            scratch_shapes=[pltpu.VMEM((C, 128), jnp.float32),
                            pltpu.VMEM((C, 128), jnp.float32)]),
        compiler_params=pltpu.CompilerParams(
            dimension_semantics=("parallel", "arbitrary", "arbitrary"),
            vmem_limit_bytes=_VMEM_LIMIT_BYTES),
    )(xr, gamma, beta)

    # ---- pass 2: streamed y = x*scale + shift; [clean, adv] swap via out index_map ----
    a_bs, a_hw = _choose_tiles(bs, C, HW, itemsize, affine_tile_bytes, hw_cap)
    an_bs, an_hw = bs // a_bs, HW // a_hw
    out = pl.pallas_call(
        _affine_kernel,
        out_shape=jax.ShapeDtypeStruct((N, C, HW), x.dtype),
        grid_spec=pltpu.PrefetchScalarGridSpec(
            num_scalar_prefetch=0,
            grid=(2, an_bs, an_hw),
            in_specs=[
                pl.BlockSpec((a_bs, C, a_hw),
                             lambda i, b, t: (i * an_bs + b, 0, t)),
                pl.BlockSpec((1, C, 1), lambda i, b, t: (i, 0, 0)),
                pl.BlockSpec((1, C, 1), lambda i, b, t: (i, 0, 0)),
            ],
            out_specs=pl.BlockSpec((a_bs, C, a_hw),
                                   lambda i, b, t: ((1 - i) * an_bs + b, 0, t)),
        ),
        compiler_params=pltpu.CompilerParams(
            dimension_semantics=("parallel", "parallel", "parallel"),
            vmem_limit_bytes=_VMEM_LIMIT_BYTES),
    )(xr, scale, shift)

    out = out.reshape(N, C, H, W)
    stats = (
        mean[0].reshape(1, C, 1, 1),   # batch mean adv
        std[0].reshape(1, C, 1, 1),    # batch std adv
        mean[1].reshape(1, C, 1, 1),   # batch mean clean
        std[1].reshape(1, C, 1, 1),    # batch std clean
    )
    return out, stats


# ---------------------------------------------------------------------------
# Eval-mode forward: normalize with running stats + affine, single fused pass.
# ---------------------------------------------------------------------------
def dualbn_eval(x, running_mean, running_std, gamma, beta,
                *, tile_bytes=_AFFINE_TILE_BYTES, hw_cap=None):
    N, C, H, W = x.shape
    HW = H * W
    xr = x.reshape(N, C, HW)
    itemsize = jnp.dtype(x.dtype).itemsize

    t_n, t_hw = _choose_tiles(N, C, HW, itemsize, tile_bytes, hw_cap)
    n_rows, n_hw = N // t_n, HW // t_hw

    m = running_mean.reshape(1, C, 1).astype(jnp.float32)
    s = running_std.reshape(1, C, 1).astype(jnp.float32)
    g = gamma.reshape(1, C, 1).astype(jnp.float32)
    b = beta.reshape(1, C, 1).astype(jnp.float32)

    chan_spec = pl.BlockSpec((1, C, 1), lambda r, t: (0, 0, 0))
    out = pl.pallas_call(
        _eval_affine_kernel,
        out_shape=jax.ShapeDtypeStruct((N, C, HW), x.dtype),
        grid_spec=pltpu.PrefetchScalarGridSpec(
            num_scalar_prefetch=0,
            grid=(n_rows, n_hw),
            in_specs=[
                pl.BlockSpec((t_n, C, t_hw), lambda r, t: (r, 0, t)),
                chan_spec, chan_spec, chan_spec, chan_spec,
            ],
            out_specs=pl.BlockSpec((t_n, C, t_hw), lambda r, t: (r, 0, t)),
        ),
        compiler_params=pltpu.CompilerParams(
            dimension_semantics=("parallel", "parallel"),
            vmem_limit_bytes=_VMEM_LIMIT_BYTES),
    )(xr, m, s, g, b)
    return out.reshape(N, C, H, W)


# ---------------------------------------------------------------------------
# Functional module mirroring CrossTraining_DualBN_swap.
# ---------------------------------------------------------------------------
class CrossTrainingDualBNSwap:
    def __init__(self, num_features, eps=1e-5, momentum=0.1, key=None):
        self.eps = eps  # NOTE: eps is unused in the reference forward; kept for parity
        self.momentum = momentum
        C = num_features
        if key is None:
            key = jax.random.PRNGKey(0)
        k1, k2, k3, k4 = jax.random.split(key, 4)
        # Module __init__ uses ones/zeros; deterministic perturbations so the
        # affine transform is exercised non-trivially.
        self.gamma_clean = 1.0 + 0.1 * jax.random.normal(k1, (1, C, 1, 1), jnp.float32)
        self.beta_clean = 0.1 * jax.random.normal(k2, (1, C, 1, 1), jnp.float32)
        self.gamma_adv = 1.0 + 0.1 * jax.random.normal(k3, (1, C, 1, 1), jnp.float32)
        self.beta_adv = 0.1 * jax.random.normal(k4, (1, C, 1, 1), jnp.float32)
        self.running_avg_mean_clean = jnp.ones((1, C, 1, 1), jnp.float32)
        self.running_avg_std_clean = jnp.zeros((1, C, 1, 1), jnp.float32)
        self.running_avg_mean_adv = jnp.ones((1, C, 1, 1), jnp.float32)
        self.running_avg_std_adv = jnp.zeros((1, C, 1, 1), jnp.float32)
        self.training = True

    def forward(self, x, bn_name=None):
        if self.training:
            out, (m_adv, s_adv, m_clean, s_clean) = dualbn_train(
                x, self.gamma_adv, self.beta_adv,
                self.gamma_clean, self.beta_clean)
            # Running-buffer EMA updates are tiny (C,)-sized ops kept in plain
            # XLA (module state), off the critical path of `out`.
            mo = self.momentum
            self.running_avg_mean_clean = (
                self.running_avg_mean_clean
                + mo * (m_clean - self.running_avg_mean_clean))
            self.running_avg_std_clean = (
                self.running_avg_std_clean
                + mo * (s_clean - self.running_avg_std_clean))
            self.running_avg_mean_adv = (
                self.running_avg_mean_adv
                + mo * (m_adv - self.running_avg_mean_adv))
            self.running_avg_std_adv = (
                self.running_avg_std_adv
                + mo * (s_adv - self.running_avg_std_adv))
            return out
        else:
            if bn_name == 'pgd':
                return dualbn_eval(x, self.running_avg_mean_adv,
                                   self.running_avg_std_adv,
                                   self.gamma_adv, self.beta_adv)
            elif bn_name == 'normal':
                return dualbn_eval(x, self.running_avg_mean_clean,
                                   self.running_avg_std_clean,
                                   self.gamma_clean, self.beta_clean)
            return x


# ---------------------------------------------------------------------------
# Pure-JAX reference of the training forward (for correctness check).
# ---------------------------------------------------------------------------
def ref_forward_train(x, gamma_adv, beta_adv, gamma_clean, beta_clean):
    bs = x.shape[0] // 2
    xa, xc = x[:bs], x[bs:]
    ma = jnp.mean(xa, axis=(0, 2, 3), keepdims=True)
    sa = jnp.std(xa, axis=(0, 2, 3), keepdims=True, ddof=1)
    mc = jnp.mean(xc, axis=(0, 2, 3), keepdims=True)
    sc = jnp.std(xc, axis=(0, 2, 3), keepdims=True, ddof=1)
    ya = (xa - ma) / sa * gamma_adv + beta_adv
    yc = (xc - mc) / sc * gamma_clean + beta_clean
    return jnp.concatenate([yc, ya], axis=0)


if __name__ == "__main__":
    key = jax.random.PRNGKey(0)
    kx, kp = jax.random.split(key)

    B_half, C, H, W = 2, 4, 16, 16          # x = cat([X_adv, X_clean]) -> N = 4
    x = jax.random.normal(kx, (2 * B_half, C, H, W), jnp.float32)

    mod = CrossTrainingDualBNSwap(num_features=C, key=kp)
    ref = ref_forward_train(x, mod.gamma_adv, mod.beta_adv,
                            mod.gamma_clean, mod.beta_clean)

    # --- training-mode forward (default tiling: one tile per half) ---
    mod.training = True
    out_train = mod.forward(x, bn_name='pgd')
    out_train = jax.block_until_ready(out_train)
    assert out_train.shape == x.shape
    assert jnp.allclose(out_train, ref, rtol=1e-4, atol=1e-4), "training mismatch"

    # --- training forward with tiny tiles: multi-tile streaming, x128 lane path ---
    out_tiled, _ = dualbn_train(x, mod.gamma_adv, mod.beta_adv,
                                mod.gamma_clean, mod.beta_clean,
                                stats_tile_bytes=2048, affine_tile_bytes=2048,
                                hw_cap=128)
    out_tiled = jax.block_until_ready(out_tiled)
    assert jnp.allclose(out_tiled, ref, rtol=1e-4, atol=1e-4), "tiled training mismatch"

    # --- training forward with non-x128 lane tiles: exercises the remainder path ---
    out_rem, _ = dualbn_train(x, mod.gamma_adv, mod.beta_adv,
                              mod.gamma_clean, mod.beta_clean,
                              stats_tile_bytes=2048, affine_tile_bytes=2048,
                              hw_cap=64)
    out_rem = jax.block_until_ready(out_rem)
    assert jnp.allclose(out_rem, ref, rtol=1e-4, atol=1e-4), "remainder training mismatch"

    # --- eval-mode forward (uses running buffers updated by the training step) ---
    mod.training = False
    out_eval = mod.forward(x, bn_name='pgd')
    out_eval = jax.block_until_ready(out_eval)
    ref_eval = ((x - mod.running_avg_mean_adv) / mod.running_avg_std_adv
                * mod.gamma_adv + mod.beta_adv)
    assert jnp.allclose(out_eval, ref_eval, rtol=1e-4, atol=1e-4), "eval mismatch"

    print("KERNEL_OK")
</pallas_src>

<mosaic_0001>
module attributes {stable_mosaic.version = 11 : i64} {
  func.func @_stats_kernel(%arg0: i32, %arg1: i32, %arg2: i32, %arg3: memref<2x4x256xf32, #tpu.memory_space<vmem>>, %arg4: memref<1x4x1xf32, #tpu.memory_space<vmem>>, %arg5: memref<1x4x1xf32, #tpu.memory_space<vmem>>, %arg6: memref<1x4x1xf32, #tpu.memory_space<vmem>>, %arg7: memref<1x4x1xf32, #tpu.memory_space<vmem>>, %arg8: memref<1x4x1xf32, #tpu.memory_space<vmem>>, %arg9: memref<1x4x1xf32, #tpu.memory_space<vmem>>, %arg10: memref<4x128xf32, #tpu.memory_space<vmem>>, %arg11: memref<4x128xf32, #tpu.memory_space<vmem>>) attributes {dimension_semantics = [#tpu.dimension_semantics<parallel>, #tpu.dimension_semantics<arbitrary>, #tpu.dimension_semantics<arbitrary>], iteration_bounds = array<i64: 2, 1, 1>, scalar_prefetch = 0 : i64, scratch_operands = 2 : i64, tpu.core_type = #tpu.core_type<tc>, window_params = [{transform_indices = @transform_0, window_bounds = array<i64: 2, 4, 256>}, {transform_indices = @transform_1, window_bounds = array<i64: 1, 4, 1>}, {transform_indices = @transform_2, window_bounds = array<i64: 1, 4, 1>}, {transform_indices = @transform_3, window_bounds = array<i64: 1, 4, 1>}, {transform_indices = @transform_4, window_bounds = array<i64: 1, 4, 1>}, {transform_indices = @transform_5, window_bounds = array<i64: 1, 4, 1>}, {transform_indices = @transform_6, window_bounds = array<i64: 1, 4, 1>}]} {
    %c0_i32 = arith.constant 0 : i32
    %0 = arith.cmpi eq, %arg1, %c0_i32 : i32
    %c0_i32_0 = arith.constant 0 : i32
    %1 = arith.cmpi eq, %arg2, %c0_i32_0 : i32
    %2 = arith.andi %0, %1 : i1
    %3 = arith.extui %2 : i1 to i32
    %c0_i32_1 = arith.constant 0 : i32
    %4 = arith.cmpi ne, %3, %c0_i32_1 : i32
    scf.if %4 {
      %cst_28 = arith.constant 0.000000e+00 : f32
      %30 = vector.broadcast %cst_28 : f32 to vector<4x128xf32>
      %c0_29 = arith.constant 0 : index
      %c0_30 = arith.constant 0 : index
      %31 = vector.load %arg10[%c0_29, %c0_30] : memref<4x128xf32, #tpu.memory_space<vmem>>, vector<4x128xf32>
      tpu.vector_store %arg10[%c0_29, %c0_30], %30 {strides = array<i32>} : memref<4x128xf32, #tpu.memory_space<vmem>>, vector<4x128xf32>,
      %cst_31 = arith.constant 0.000000e+00 : f32
      %32 = vector.broadcast %cst_31 : f32 to vector<4x128xf32>
      %c0_32 = arith.constant 0 : index
      %c0_33 = arith.constant 0 : index
      %33 = vector.load %arg11[%c0_32, %c0_33] : memref<4x128xf32, #tpu.memory_space<vmem>>, vector<4x128xf32>
      tpu.vector_store %arg11[%c0_32, %c0_33], %32 {strides = array<i32>} : memref<4x128xf32, #tpu.memory_space<vmem>>, vector<4x128xf32>,
    } else {
    }
    %c0 = arith.constant 0 : index
    %c0_2 = arith.constant 0 : index
    %c0_3 = arith.constant 0 : index
    %5 = vector.load %arg3[%c0, %c0_2, %c0_3] : memref<2x4x256xf32, #tpu.memory_space<vmem>>, vector<2x4x128xf32>
    %c0_4 = arith.constant 0 : index
    %c0_5 = arith.constant 0 : index
    %6 = vector.load %arg10[%c0_4, %c0_5] : memref<4x128xf32, #tpu.memory_space<vmem>>, vector<4x128xf32>
    %cst = arith.constant dense<0.000000e+00> : vector<4x128xf32>
    %7 = vector.multi_reduction <add>, %5, %cst [0] : vector<2x4x128xf32> to vector<4x128xf32>
    %8 = arith.addf %6, %7 : vector<4x128xf32>
    %c0_6 = arith.constant 0 : index
    %c0_7 = arith.constant 0 : index
    %9 = vector.load %arg10[%c0_6, %c0_7] : memref<4x128xf32, #tpu.memory_space<vmem>>, vector<4x128xf32>
    tpu.vector_store %arg10[%c0_6, %c0_7], %8 {strides = array<i32>} : memref<4x128xf32, #tpu.memory_space<vmem>>, vector<4x128xf32>,
    %c0_8 = arith.constant 0 : index
    %c0_9 = arith.constant 0 : index
    %10 = vector.load %arg11[%c0_8, %c0_9] : memref<4x128xf32, #tpu.memory_space<vmem>>, vector<4x128xf32>
    %11 = arith.mulf %5, %5 : vector<2x4x128xf32>
    %cst_10 = arith.constant dense<0.000000e+00> : vector<4x128xf32>
    %12 = vector.multi_reduction <add>, %11, %cst_10 [0] : vector<2x4x128xf32> to vector<4x128xf32>
    %13 = arith.addf %10, %12 : vector<4x128xf32>
    %c0_11 = arith.constant 0 : index
    %c0_12 = arith.constant 0 : index
    %14 = vector.load %arg11[%c0_11, %c0_12] : memref<4x128xf32, #tpu.memory_space<vmem>>, vector<4x128xf32>
    tpu.vector_store %arg11[%c0_11, %c0_12], %13 {strides = array<i32>} : memref<4x128xf32, #tpu.memory_space<vmem>>, vector<4x128xf32>,
    %c0_13 = arith.constant 0 : index
    %c0_14 = arith.constant 0 : index
    %c128 = arith.constant 128 : index
    %15 = vector.load %arg3[%c0_13, %c0_14, %c128] : memref<2x4x256xf32, #tpu.memory_space<vmem>>, vector<2x4x128xf32>
    %c0_15 = arith.constant 0 : index
    %c0_16 = arith.constant 0 : index
    %16 = vector.load %arg10[%c0_15, %c0_16] : memref<4x128xf32, #tpu.memory_space<vmem>>, vector<4x128xf32>
    %cst_17 = arith.constant dense<0.000000e+00> : vector<4x128xf32>
    %17 = vector.multi_reduction <add>, %15, %cst_17 [0] : vector<2x4x128xf32> to vector<4x128xf32>
    %18 = arith.addf %16, %17 : vector<4x128xf32>
    %c0_18 = arith.constant 0 : index
    %c0_19 = arith.constant 0 : index
    %19 = vector.load %arg10[%c0_18, %c0_19] : memref<4x128xf32, #tpu.memory_space<vmem>>, vector<4x128xf32>
    tpu.vector_store %arg10[%c0_18, %c0_19], %18 {strides = array<i32>} : memref<4x128xf32, #tpu.memory_space<vmem>>, vector<4x128xf32>,
    %c0_20 = arith.constant 0 : index
    %c0_21 = arith.constant 0 : index
    %20 = vector.load %arg11[%c0_20, %c0_21] : memref<4x128xf32, #tpu.memory_space<vmem>>, vector<4x128xf32>
    %21 = arith.mulf %15, %15 : vector<2x4x128xf32>
    %cst_22 = arith.constant dense<0.000000e+00> : vector<4x128xf32>
    %22 = vector.multi_reduction <add>, %21, %cst_22 [0] : vector<2x4x128xf32> to vector<4x128xf32>
    %23 = arith.addf %20, %22 : vector<4x128xf32>
    %c0_23 = arith.constant 0 : index
    %c0_24 = arith.constant 0 : index
    %24 = vector.load %arg11[%c0_23, %c0_24] : memref<4x128xf32, #tpu.memory_space<vmem>>, vector<4x128xf32>
    tpu.vector_store %arg11[%c0_23, %c0_24], %23 {strides = array<i32>} : memref<4x128xf32, #tpu.memory_space<vmem>>, vector<4x128xf32>,
    %c0_i32_25 = arith.constant 0 : i32
    %25 = arith.cmpi eq, %arg1, %c0_i32_25 : i32
    %c0_i32_26 = arith.constant 0 : i32
    %26 = arith.cmpi eq, %arg2, %c0_i32_26 : i32
    %27 = arith.andi %25, %26 : i1
    %28 = arith.extui %27 : i1 to i32
    %c0_i32_27 = arith.constant 0 : i32
    %29 = arith.cmpi ne, %28, %c0_i32_27 : i32
    scf.if %29 {
      %c0_28 = arith.constant 0 : index
      %c0_29 = arith.constant 0 : index
      %30 = vector.load %arg10[%c0_28, %c0_29] : memref<4x128xf32, #tpu.memory_space<vmem>>, vector<4x128xf32>
      %cst_30 = arith.constant dense<0.000000e+00> : vector<4xf32>
      %31 = vector.multi_reduction <add>, %30, %cst_30 [1] : vector<4x128xf32> to vector<4xf32>
      %32 = vector.shape_cast %31 : vector<4xf32> to vector<4x1xf32>
      %33 = vector.shape_cast %32 : vector<4x1xf32> to vector<1x4x1xf32>
      %c0_31 = arith.constant 0 : index
      %c0_32 = arith.constant 0 : index
      %34 = vector.load %arg11[%c0_31, %c0_32] : memref<4x128xf32, #tpu.memory_space<vmem>>, vector<4x128xf32>
      %cst_33 = arith.constant dense<0.000000e+00> : vector<4xf32>
      %35 = vector.multi_reduction <add>, %34, %cst_33 [1] : vector<4x128xf32> to vector<4xf32>
      %36 = vector.shape_cast %35 : vector<4xf32> to vector<4x1xf32>
      %37 = vector.shape_cast %36 : vector<4x1xf32> to vector<1x4x1xf32>
      %cst_34 = arith.constant 5.120000e+02 : f32
      %38 = vector.broadcast %cst_34 : f32 to vector<1x4x1xf32>
      %39 = arith.divf %33, %38 : vector<1x4x1xf32>
      %cst_35 = arith.constant 5.120000e+02 : f32
      %40 = vector.broadcast %cst_35 : f32 to vector<1x4x1xf32>
      %41 = arith.mulf %40, %39 : vector<1x4x1xf32>
      %42 = arith.mulf %41, %39 : vector<1x4x1xf32>
      %43 = arith.subf %37, %42 : vector<1x4x1xf32>
      %cst_36 = arith.constant 0.000000e+00 : f32
      %44 = vector.broadcast %cst_36 : f32 to vector<1x4x1xf32>
      %45 = arith.maximumf %43, %44 : vector<1x4x1xf32>
      %cst_37 = arith.constant 5.110000e+02 : f32
      %46 = vector.broadcast %cst_37 : f32 to vector<1x4x1xf32>
      %47 = arith.divf %45, %46 : vector<1x4x1xf32>
      %48 = math.sqrt %47 : vector<1x4x1xf32>
      %c0_38 = arith.constant 0 : index
      %c0_39 = arith.constant 0 : index
      %c0_40 = arith.constant 0 : index
      %49 = vector.load %arg4[%c0_38, %c0_39, %c0_40] : memref<1x4x1xf32, #tpu.memory_space<vmem>>, vector<1x4x1xf32>
      %50 = arith.divf %49, %48 : vector<1x4x1xf32>
      %c0_41 = arith.constant 0 : index
      %c0_42 = arith.constant 0 : index
      %c0_43 = arith.constant 0 : index
      %51 = vector.load %arg5[%c0_41, %c0_42, %c0_43] : memref<1x4x1xf32, #tpu.memory_space<vmem>>, vector<1x4x1xf32>
      %52 = arith.mulf %39, %50 : vector<1x4x1xf32>
      %53 = arith.subf %51, %52 : vector<1x4x1xf32>
      %c0_44 = arith.constant 0 : index
      %c0_45 = arith.constant 0 : index
      %c0_46 = arith.constant 0 : index
      %54 = vector.load %arg8[%c0_44, %c0_45, %c0_46] : memref<1x4x1xf32, #tpu.memory_space<vmem>>, vector<1x4x1xf32>
      tpu.vector_store %arg8[%c0_44, %c0_45, %c0_46], %39 {strides = array<i32>} : memref<1x4x1xf32, #tpu.memory_space<vmem>>, vector<1x4x1xf32>,
      %c0_47 = arith.constant 0 : index
      %c0_48 = arith.constant 0 : index
      %c0_49 = arith.constant 0 : index
      %55 = vector.load %arg9[%c0_47, %c0_48, %c0_49] : memref<1x4x1xf32, #tpu.memory_space<vmem>>, vector<1x4x1xf32>
      tpu.vector_store %arg9[%c0_47, %c0_48, %c0_49], %48 {strides = array<i32>} : memref<1x4x1xf32, #tpu.memory_space<vmem>>, vector<1x4x1xf32>,
      %c0_50 = arith.constant 0 : index
      %c0_51 = arith.constant 0 : index
      %c0_52 = arith.constant 0 : index
      %56 = vector.load %arg6[%c0_50, %c0_51, %c0_52] : memref<1x4x1xf32, #tpu.memory_space<vmem>>, vector<1x4x1xf32>
      tpu.vector_store %arg6[%c0_50, %c0_51, %c0_52], %50 {strides = array<i32>} : memref<1x4x1xf32, #tpu.memory_space<vmem>>, vector<1x4x1xf32>,
      %c0_53 = arith.constant 0 : index
      %c0_54 = arith.constant 0 : index
      %c0_55 = arith.constant 0 : index
      %57 = vector.load %arg7[%c0_53, %c0_54, %c0_55] : memref<1x4x1xf32, #tpu.memory_space<vmem>>, vector<1x4x1xf32>
      tpu.vector_store %arg7[%c0_53, %c0_54, %c0_55], %53 {strides = array<i32>} : memref<1x4x1xf32, #tpu.memory_space<vmem>>, vector<1x4x1xf32>,
    } else {
    }
    return
  }
  func.func @transform_0(%arg0: i32, %arg1: i32, %arg2: i32) -> (i32, i32, i32) {
    %c1_i32 = arith.constant 1 : i32
    %0 = arith.muli %arg0, %c1_i32 : i32
    %1 = arith.addi %0, %arg1 : i32
    %c0_i32 = arith.constant 0 : i32
    %c0_i32_0 = arith.constant 0 : i32
    return %1, %c0_i32, %arg2 : i32, i32, i32
  }
  func.func @transform_1(%arg0: i32, %arg1: i32, %arg2: i32) -> (i32, i32, i32) {
    %c0_i32 = arith.constant 0 : i32
    %c0_i32_0 = arith.constant 0 : i32
    %c0_i32_1 = arith.constant 0 : i32
    return %arg0, %c0_i32, %c0_i32_0 : i32, i32, i32
  }
  func.func @transform_2(%arg0: i32, %arg1: i32, %arg2: i32) -> (i32, i32, i32) {
    %c0_i32 = arith.constant 0 : i32
    %c0_i32_0 = arith.constant 0 : i32
    %c0_i32_1 = arith.constant 0 : i32
    return %arg0, %c0_i32, %c0_i32_0 : i32, i32, i32
  }
  func.func @transform_3(%arg0: i32, %arg1: i32, %arg2: i32) -> (i32, i32, i32) {
    %c0_i32 = arith.constant 0 : i32
    %c0_i32_0 = arith.constant 0 : i32
    %c0_i32_1 = arith.constant 0 : i32
    return %arg0, %c0_i32, %c0_i32_0 : i32, i32, i32
  }
  func.func @transform_4(%arg0: i32, %arg1: i32, %arg2: i32) -> (i32, i32, i32) {
    %c0_i32 = arith.constant 0 : i32
    %c0_i32_0 = arith.constant 0 : i32
    %c0_i32_1 = arith.constant 0 : i32
    return %arg0, %c0_i32, %c0_i32_0 : i32, i32, i32
  }
  func.func @transform_5(%arg0: i32, %arg1: i32, %arg2: i32) -> (i32, i32, i32) {
    %c0_i32 = arith.constant 0 : i32
    %c0_i32_0 = arith.constant 0 : i32
    %c0_i32_1 = arith.constant 0 : i32
    return %arg0, %c0_i32, %c0_i32_0 : i32, i32, i32
  }
  func.func @transform_6(%arg0: i32, %arg1: i32, %arg2: i32) -> (i32, i32, i32) {
    %c0_i32 = arith.constant 0 : i32
    %c0_i32_0 = arith.constant 0 : i32
    %c0_i32_1 = arith.constant 0 : i32
    return %arg0, %c0_i32, %c0_i32_0 : i32, i32, i32
  }
}

</mosaic_0001>

<llo_original>
// kernel: tpu_custom_call.1
$region0: #{tpu_custom_call.1}
  #allocation0 [shape = 'u32[]', space=smem, size = 0x4, offset = 0x4, fixed_abs, tag = 'smem constant byte address 0x4 - core index']
  #allocation1 [shape = 'u32[144,128]{1,0:T(1,128)}', space=vmem, size = 0x12000, scoped, tag = 'internal scratch']
  #allocation2 [shape = 'f32[4,128]{1,0:T(4,128)}', space=vmem, size = 0x800, scoped, tag = 'scratch operand']
  #allocation3 [shape = 'f32[4,128]{1,0:T(4,128)}', space=vmem, size = 0x800, scoped, tag = 'scratch operand']
  %s0 = inlined_call_operand.hbm [shape: f32[4,4,256], index: 0, kind: input, shape index: {}]
  %s1 = inlined_call_operand.vmem [shape: f32[2,4,1], index: 1, kind: input, shape index: {}]
  %s2 = inlined_call_operand.vmem [shape: f32[2,4,1], index: 2, kind: input, shape index: {}]
  %s3 = inlined_call_operand.vmem [shape: f32[2,4,1], index: 3, kind: output, shape index: {0}]
  %s4 = inlined_call_operand.vmem [shape: f32[2,4,1], index: 4, kind: output, shape index: {1}]
  %s5 = inlined_call_operand.vmem [shape: f32[2,4,1], index: 5, kind: output, shape index: {2}]
  %s6 = inlined_call_operand.vmem [shape: f32[2,4,1], index: 6, kind: output, shape index: {3}]
  %7 = xla_tuple %s3, %s4, %s5, %s6
  %s8 = sld [smem:[#allocation0]]
  $region81: #{tpu_custom_call.1} parent=0
    _
  %s10 = ssub.s32 1, %s8
  %s11 = scalar_select 0, %s10, %s8
  $region1: #{tpu_custom_call.1} parent=0
    #allocation4 [shape = 'u8[16384]{0}', space=vmem, size = 0x4000, scoped, tag = 'input window, operand 0']
    #allocation5 [shape = 's32[2]{0}', space=sflag, size = 0x8, scoped, tag = 'scoped memory for tpu_custom_call.1']
    %12 = vsyncpa [#allocation5], 0
    %s13 = scalar_lea.sflag [#allocation5], 1
    %14 = vsyncpa %s13, 0
    loop: start=0, step=1, limit=4
    $region2: #{tpu_custom_call.1} parent=1 // loop_pre_header
      _
    $region3: #{tpu_custom_call.1} parent=1 // loop_header
      %s16 = sphi 0, %s20
      %p17 = scmp.ge.s32.totalorder %s16, 4
      %s23 = sphi 0, %s42
      %s24 = sphi 0, %s38
      %s25 = sphi 0, %s34
      %s26 = sphi 0, %s23
      %s27 = sphi 0, %s24
      %s28 = sphi 0, %s25
      %s29 = sphi 0, %s26
      %s30 = sphi 0, %s27
      %s31 = sphi 0, %s28
      %s49 = sphi 0, %s51
      %s52 = sphi 0, %s49
      %s53 = sphi 0, %s52
      %s69 = sphi 0, %s53
      %s75 = sphi 0, %s77
      %s78 = sphi 0, %s75
      %s79 = sphi 0, %s78
      %s95 = sphi 0, %s79
      %s101 = sphi 0, %s103
      %s104 = sphi 0, %s101
      %s105 = sphi 0, %s104
      %s121 = sphi 0, %s105
      %s127 = sphi 0, %s129
      %s130 = sphi 0, %s127
      %s131 = sphi 0, %s130
      %s147 = sphi 0, %s131
      %s153 = sphi 0, %s155
      %s156 = sphi 0, %s153
      %s157 = sphi 0, %s156
      %s173 = sphi 0, %s157
      %s179 = sphi 0, %s181
      %s182 = sphi 0, %s179
      %s183 = sphi 0, %s182
      %s199 = sphi 0, %s183
      %s205 = sphi 0, %s207
      %s208 = sphi 0, %s205
      %s209 = sphi 0, %s208
      %s225 = sphi 0, %s209
    $region4: #{tpu_custom_call.1} parent=1 // loop_header_branch
      %19 = sbr.rel (%p17) target = $region8
    $region5: #{tpu_custom_call.1} parent=1 // loop_body
      %s21 = ssub.s32 %s16, 1
      %s22 = ssub.s32 %s16, 2
      %s32 = sadd.s32 1, %s25
      %p33 = scmp.ge.s32.totalorder %s32, 1
      %s34 = scalar_select %p33, 0, %s32
      %s35 = sadd.s32 1, %s24
      %s36 = scalar_select %p33, %s35, %s24
      %p37 = scmp.ge.s32.totalorder %s36, 1
      %s38 = scalar_select %p37, 0, %s36
      %s39 = sadd.s32 1, %s23
      %s40 = scalar_select %p37, %s39, %s23
      %p41 = scmp.ge.s32.totalorder %s40, 2
      %s42 = scalar_select %p41, 0, %s40
      %s43 = sadd.s32 %s23, %s24
      %s44 = sadd.s32 %s42, %s38
      %s45 = ssub.s32 %s43, %s44
      %s46 = ssub.s32 %s25, %s34
      %s47 = sor.u32 %s45, %s46
      %p48 = scmp.eq.s32.totalorder %s47, 0
      %s50 = sadd.s32 %s49, 1
      %s51 = scalar_select %p48, %s49, %s50
      %p54 = pneg %p48
      %p55 = scmp.eq.s32.totalorder %s16, 1
      %p56 = por %p54, %p55
      %p57 = scmp.ne.s32.totalorder %s49, %s52
      %p58 = scmp.eq.s32.totalorder %s16, 0
      %p59 = por %p57, %p58
      %p60 = scmp.ne.s32.totalorder %s49, %s52
      %p61 = scmp.eq.s32.totalorder %s21, 1
      %p62 = por %p60, %p61
      %p63 = scmp.ne.s32.totalorder %s52, %s53
      %p64 = scmp.eq.s32.totalorder %s21, 0
      %p65 = por %p63, %p64
      %p66 = scmp.ne.s32.totalorder %s52, %s53
      %p67 = scmp.eq.s32.totalorder %s22, 1
      %p68 = por %p66, %p67
      %p70 = scmp.ne.s32.totalorder %s53, %s69
      %p71 = scmp.eq.s32.totalorder %s22, 0
      %p72 = por %p70, %p71
      %s73 = ssub.s32 %s23, %s42
      %p74 = scmp.eq.s32.totalorder %s73, 0
      %s76 = sadd.s32 %s75, 1
      %s77 = scalar_select %p74, %s75, %s76
      %p80 = pneg %p74
      %p81 = scmp.eq.s32.totalorder %s16, 1
      %p82 = por %p80, %p81
      %p83 = scmp.ne.s32.totalorder %s75, %s78
      %p84 = scmp.eq.s32.totalorder %s16, 0
      %p85 = por %p83, %p84
      %p86 = scmp.ne.s32.totalorder %s75, %s78
      %p87 = scmp.eq.s32.totalorder %s21, 1
      %p88 = por %p86, %p87
      %p89 = scmp.ne.s32.totalorder %s78, %s79
      %p90 = scmp.eq.s32.totalorder %s21, 0
      %p91 = por %p89, %p90
      %p92 = scmp.ne.s32.totalorder %s78, %s79
      %p93 = scmp.eq.s32.totalorder %s22, 1
      %p94 = por %p92, %p93
      %p96 = scmp.ne.s32.totalorder %s79, %s95
      %p97 = scmp.eq.s32.totalorder %s22, 0
      %p98 = por %p96, %p97
      %s99 = ssub.s32 %s23, %s42
      %p100 = scmp.eq.s32.totalorder %s99, 0
      %s102 = sadd.s32 %s101, 1
      %s103 = scalar_select %p100, %s101, %s102
      %p106 = pneg %p100
      %p107 = scmp.eq.s32.totalorder %s16, 1
      %p108 = por %p106, %p107
      %p109 = scmp.ne.s32.totalorder %s101, %s104
      %p110 = scmp.eq.s32.totalorder %s16, 0
      %p111 = por %p109, %p110
      %p112 = scmp.ne.s32.totalorder %s101, %s104
      %p113 = scmp.eq.s32.totalorder %s21, 1
      %p114 = por %p112, %p113
      %p115 = scmp.ne.s32.totalorder %s104, %s105
      %p116 = scmp.eq.s32.totalorder %s21, 0
      %p117 = por %p115, %p116
      %p118 = scmp.ne.s32.totalorder %s104, %s105
      %p119 = scmp.eq.s32.totalorder %s22, 1
      %p120 = por %p118, %p119
      %p122 = scmp.ne.s32.totalorder %s105, %s121
      %p123 = scmp.eq.s32.totalorder %s22, 0
      %p124 = por %p122, %p123
      %s125 = ssub.s32 %s23, %s42
      %p126 = scmp.eq.s32.totalorder %s125, 0
      %s128 = sadd.s32 %s127, 1
      %s129 = scalar_select %p126, %s127, %s128
      %p132 = pneg %p126
      %p133 = scmp.eq.s32.totalorder %s16, 1
      %p134 = por %p132, %p133
      %p135 = scmp.ne.s32.totalorder %s127, %s130
      %p136 = scmp.eq.s32.totalorder %s16, 0
      %p137 = por %p135, %p136
      %p138 = scmp.ne.s32.totalorder %s127, %s130
      %p139 = scmp.eq.s32.totalorder %s21, 1
      %p140 = por %p138, %p139
      %p141 = scmp.ne.s32.totalorder %s130, %s131
      %p142 = scmp.eq.s32.totalorder %s21, 0
      %p143 = por %p141, %p142
      %p144 = scmp.ne.s32.totalorder %s130, %s131
      %p145 = scmp.eq.s32.totalorder %s22, 1
      %p146 = por %p144, %p145
      %p148 = scmp.ne.s32.totalorder %s131, %s147
      %p149 = scmp.eq.s32.totalorder %s22, 0
      %p150 = por %p148, %p149
      %s151 = ssub.s32 %s23, %s42
      %p152 = scmp.eq.s32.totalorder %s151, 0
      %s154 = sadd.s32 %s153, 1
      %s155 = scalar_select %p152, %s153, %s154
      %p158 = pneg %p152
      %p159 = scmp.eq.s32.totalorder %s16, 1
      %p160 = por %p158, %p159
      %p161 = scmp.ne.s32.totalorder %s153, %s156
      %p162 = scmp.eq.s32.totalorder %s16, 0
      %p163 = por %p161, %p162
      %p164 = scmp.ne.s32.totalorder %s153, %s156
      %p165 = scmp.eq.s32.totalorder %s21, 1
      %p166 = por %p164, %p165
      %p167 = scmp.ne.s32.totalorder %s156, %s157
      %p168 = scmp.eq.s32.totalorder %s21, 0
      %p169 = por %p167, %p168
      %p170 = scmp.ne.s32.totalorder %s156, %s157
      %p171 = scmp.eq.s32.totalorder %s22, 1
      %p172 = por %p170, %p171
      %p174 = scmp.ne.s32.totalorder %s157, %s173
      %p175 = scmp.eq.s32.totalorder %s22, 0
      %p176 = por %p174, %p175
      %s177 = ssub.s32 %s23, %s42
      %p178 = scmp.eq.s32.totalorder %s177, 0
      %s180 = sadd.s32 %s179, 1
      %s181 = scalar_select %p178, %s179, %s180
      %p184 = pneg %p178
      %p185 = scmp.eq.s32.totalorder %s16, 1
      %p186 = por %p184, %p185
      %p187 = scmp.ne.s32.totalorder %s179, %s182
      %p188 = scmp.eq.s32.totalorder %s16, 0
      %p189 = por %p187, %p188
      %p190 = scmp.ne.s32.totalorder %s179, %s182
      %p191 = scmp.eq.s32.totalorder %s21, 1
      %p192 = por %p190, %p191
      %p193 = scmp.ne.s32.totalorder %s182, %s183
      %p194 = scmp.eq.s32.totalorder %s21, 0
      %p195 = por %p193, %p194
      %p196 = scmp.ne.s32.totalorder %s182, %s183
      %p197 = scmp.eq.s32.totalorder %s22, 1
      %p198 = por %p196, %p197
      %p200 = scmp.ne.s32.totalorder %s183, %s199
      %p201 = scmp.eq.s32.totalorder %s22, 0
      %p202 = por %p200, %p201
      %s203 = ssub.s32 %s23, %s42
      %p204 = scmp.eq.s32.totalorder %s203, 0
      %s206 = sadd.s32 %s205, 1
      %s207 = scalar_select %p204, %s205, %s206
      %p210 = pneg %p204
      %p211 = scmp.eq.s32.totalorder %s16, 1
      %p212 = por %p210, %p211
      %p213 = scmp.ne.s32.totalorder %s205, %s208
      %p214 = scmp.eq.s32.totalorder %s16, 0
      %p215 = por %p213, %p214
      %p216 = scmp.ne.s32.totalorder %s205, %s208
      %p217 = scmp.eq.s32.totalorder %s21, 1
      %p218 = por %p216, %p217
      %p219 = scmp.ne.s32.totalorder %s208, %s209
      %p220 = scmp.eq.s32.totalorder %s21, 0
      %p221 = por %p219, %p220
      %p222 = scmp.ne.s32.totalorder %s208, %s209
      %p223 = scmp.eq.s32.totalorder %s22, 1
      %p224 = por %p222, %p223
      %p226 = scmp.ne.s32.totalorder %s209, %s225
      %p227 = scmp.eq.s32.totalorder %s22, 0
      %p228 = por %p226, %p227
      %p229 = scmp.le.s32.totalorder 1, %s16
      %p230 = scmp.lt.s32.totalorder %s16, 3
      %p231 = pnand %p229, %p230
      %p232 = pneg %p231
      // Predicated region
      $region9: #{tpu_custom_call.1} parent=5 // pred_check
        _
      $region10: #{tpu_custom_call.1} parent=5 // pred_check_branch
        %234 = sbr.rel (%p231) target = $region12
      $region11: #{tpu_custom_call.1} parent=5 // pred_region
        %s235 = ssub.s32 %s16, 1
      $region12: #{tpu_custom_call.1} parent=5 // pred_fallthru
        _
      %p236 = scmp.lt.s32.totalorder %s16, 2
      // Predicated region
      $region13: #{tpu_custom_call.1} parent=5 // pred_check
        %p237 = pneg %p236
      $region14: #{tpu_custom_call.1} parent=5 // pred_check_branch
        %239 = sbr.rel (%p237) target = $region16
      $region15: #{tpu_custom_call.1} parent=5 // pred_region
        // Predicated region
        $region17: #{tpu_custom_call.1} parent=15 // pred_check
          %p240 = pneg %p59
        $region18: #{tpu_custom_call.1} parent=15 // pred_check_branch
          %242 = sbr.rel (%p240) target = $region20
        $region19: #{tpu_custom_call.1} parent=15 // pred_region
          %s243 = sand.u32 %s49, 1
          %s244 = scalar_lea.sflag [#allocation5], %s243
          %s245 = sand.u32 %s49, 1
          %s246 = smul.addr %s245, 16
          %s247 = scalar_lea.vmem [#allocation4], %s246
          %s248 = sadd.s32 %s23, %s24
          %s249 = smul.u32 2, %s248
          %s250 = smul.u32 2, %s25
          %s252 = ssub.s32 256, 256
          %253 = vsyncadd %s244, %s252
          %s254 = smul.addr %s249, 2
          %s255 = sadd.s32 %s250, %s254
          %s256 = smul.addr %s255, 64
          %s257 = scalar_lea.hbm %s0, %s256
          %s258 = sshll.u32 %s247, 4
          %s259 = int_to_ptr.vmem [resolvable:$true] %s258
          %264 = dma.hbm_to_vmem [thread:$0]  %s257, 256, %s259, %s244, 128, 128, 8
        $region20: #{tpu_custom_call.1} parent=15 // pred_fallthru
          _
        // Predicated region
        $region21: #{tpu_custom_call.1} parent=15 // pred_check
          %p265 = pneg %p85
        $region22: #{tpu_custom_call.1} parent=15 // pred_check_branch
          %267 = sbr.rel (%p265) target = $region24
        $region23: #{tpu_custom_call.1} parent=15 // pred_region
          %p268 = scmp.lt.s32.totalorder %s23, 1
          %s269 = scalar_select %p268, %s23, 1
          %s270 = smul.addr %s269, 4
          %s271 = scalar_lea.vmem %s1, %s270
        $region24: #{tpu_custom_call.1} parent=15 // pred_fallthru
          _
        // Predicated region
        $region25: #{tpu_custom_call.1} parent=15 // pred_check
          %p272 = pneg %p111
        $region26: #{tpu_custom_call.1} parent=15 // pred_check_branch
          %274 = sbr.rel (%p272) target = $region28
        $region27: #{tpu_custom_call.1} parent=15 // pred_region
          %p275 = scmp.lt.s32.totalorder %s23, 1
          %s276 = scalar_select %p275, %s23, 1
          %s277 = smul.addr %s276, 4
          %s278 = scalar_lea.vmem %s2, %s277
        $region28: #{tpu_custom_call.1} parent=15 // pred_fallthru
          _
      $region16: #{tpu_custom_call.1} parent=5 // pred_fallthru
        _
      %p279 = scmp.le.s32.totalorder 1, %s16
      %p280 = scmp.lt.s32.totalorder %s16, 3
      %p281 = pnand %p279, %p280
      %p282 = pneg %p281
      // Predicated region
      $region29: #{tpu_custom_call.1} parent=5 // pred_check
        _
      $region30: #{tpu_custom_call.1} parent=5 // pred_check_branch
        %284 = sbr.rel (%p281) target = $region32
      $region31: #{tpu_custom_call.1} parent=5 // pred_region
        %s285 = ssub.s32 %s16, 1
        %s286 = sand.u32 %s52, 1
        %s287 = scalar_lea.sflag [#allocation5], %s286
        %s288 = sand.u32 %s52, 1
        %s289 = smul.addr %s288, 16
        %s290 = scalar_lea.vmem [#allocation4], %s289
        // Predicated region
        $region33: #{tpu_custom_call.1} parent=31 // pred_check
          %p291 = pneg %p65
        $region34: #{tpu_custom_call.1} parent=31 // pred_check_branch
          %293 = sbr.rel (%p291) target = $region36
        $region35: #{tpu_custom_call.1} parent=31 // pred_region
          %294 = dma.done %s287, 256
        $region36: #{tpu_custom_call.1} parent=31 // pred_fallthru
          _
        %s295 = sand.u32 %s52, 1
        %s296 = scalar_lea.sflag [#allocation5], %s295
        %s297 = sand.u32 %s52, 1
        %s298 = smul.addr %s297, 16
        %s299 = scalar_lea.vmem [#allocation4], %s298
        %p300 = pneg %p65
        %p301 = pneg %p62
        %p302 = scmp.lt.s32.totalorder %s26, 1
        %s303 = scalar_select %p302, %s26, 1
        %s304 = smul.addr %s303, 4
        %s305 = scalar_lea.vmem %s1, %s304
        %p306 = pneg %p91
        %p307 = pneg %p88
        %p308 = scmp.lt.s32.totalorder %s26, 1
        %s309 = scalar_select %p308, %s26, 1
        %s310 = smul.addr %s309, 4
        %s311 = scalar_lea.vmem %s2, %s310
        %p312 = pneg %p117
        %p313 = pneg %p114
        %p314 = pneg %p143
        %p315 = pneg %p140
        %p316 = scmp.lt.s32.totalorder %s26, 1
        %s317 = scalar_select %p316, %s26, 1
        %s318 = smul.addr %s317, 4
        %s319 = scalar_lea.vmem %s3, %s318
        %p320 = pneg %p169
        %p321 = pneg %p166
        %p322 = scmp.lt.s32.totalorder %s26, 1
        %s323 = scalar_select %p322, %s26, 1
        %s324 = smul.addr %s323, 4
        %s325 = scalar_lea.vmem %s4, %s324
        %p326 = pneg %p195
        %p327 = pneg %p192
        %p328 = scmp.lt.s32.totalorder %s26, 1
        %s329 = scalar_select %p328, %s26, 1
        %s330 = smul.addr %s329, 4
        %s331 = scalar_lea.vmem %s5, %s330
        %p332 = pneg %p221
        %p333 = pneg %p218
        %p334 = scmp.lt.s32.totalorder %s26, 1
        %s335 = scalar_select %p334, %s26, 1
        %s336 = smul.addr %s335, 4
        %s337 = scalar_lea.vmem %s6, %s336
        %s338 = sadd.s32 %s26, %s27
        %s339 = smul.u32 2, %s338
        %s340 = smul.u32 2, %s28
        %p341 = scmp.lt.s32.totalorder %s26, 1
        %s342 = scalar_select %p341, %s26, 1
        %s343 = smul.addr %s342, 4
        %s344 = scalar_lea.vmem %s1, %s343
        %p345 = scmp.lt.s32.totalorder %s26, 1
        %s346 = scalar_select %p345, %s26, 1
        %s347 = smul.addr %s346, 4
        %s348 = scalar_lea.vmem %s2, %s347
        %p349 = scmp.lt.s32.totalorder %s26, 1
        %s350 = scalar_select %p349, %s26, 1
        %s351 = smul.addr %s350, 4
        %s352 = scalar_lea.vmem %s3, %s351
        %p353 = scmp.lt.s32.totalorder %s26, 1
        %s354 = scalar_select %p353, %s26, 1
        %s355 = smul.addr %s354, 4
        %s356 = scalar_lea.vmem %s4, %s355
        %p357 = scmp.lt.s32.totalorder %s26, 1
        %s358 = scalar_select %p357, %s26, 1
        %s359 = smul.addr %s358, 4
        %s360 = scalar_lea.vmem %s5, %s359
        %p361 = scmp.lt.s32.totalorder %s26, 1
        %s362 = scalar_select %p361, %s26, 1
        %s363 = smul.addr %s362, 4
        %s364 = scalar_lea.vmem %s6, %s363
        %p365 = scmp.eq.s32.totalorder %s27, 0
        %p366 = scmp.eq.s32.totalorder %s28, 0
        %p367 = pnand %p365, %p366
        %p368 = pneg %p367
        // Predicated region
        $region37: #{tpu_custom_call.1} parent=31 // pred_check
          _
        $region38: #{tpu_custom_call.1} parent=31 // pred_check_branch
          %370 = sbr.rel (%p367) target = $region40
        $region39: #{tpu_custom_call.1} parent=31 // pred_region
          %371 = vst [vmem:[#allocation2] sm:$0xf] 0.0
          %372 = vst [vmem:[#allocation3] sm:$0xf] 0.0
        $region40: #{tpu_custom_call.1} parent=31 // pred_fallthru
          _
        %v373 = vld [vmem:[%s290] sm:$0xf]
        %v374 = vld [vmem:[%s290 + $0x8] sm:$0xf]
        %v375 = vld [vmem:[#allocation2] sm:$0xf]
        %vm376 = vcmask 1043456
        %v377 = vsel %vm376, %v373, 0.0
        %v378 = vsel %vm376, %v374, 0.0
        %v379 = vadd.f32 %v377, %v378
        %v380 = vadd.f32 %v375, %v379
        %381 = vst [vmem:[#allocation2] sm:$0xf] %v380
        %v382 = vld [vmem:[#allocation3] sm:$0xf]
        %v383 = vmul.f32 %v373, %v373
        %v384 = vmul.f32 %v374, %v374
        %v385 = vsel %vm376, %v383, 0.0
        %v386 = vsel %vm376, %v384, 0.0
        %v387 = vadd.f32 %v385, %v386
        %v388 = vadd.f32 %v382, %v387
        %389 = vst [vmem:[#allocation3] sm:$0xf] %v388
        %v390 = vld [vmem:[%s290 + $0x4] sm:$0xf]
        %v391 = vld [vmem:[%s290 + $0xc] sm:$0xf]
        %v392 = vld [vmem:[#allocation2] sm:$0xf]
        %v393 = vsel %vm376, %v390, 0.0
        %v394 = vsel %vm376, %v391, 0.0
        %v395 = vadd.f32 %v393, %v394
        %v396 = vadd.f32 %v392, %v395
        %397 = vst [vmem:[#allocation2] sm:$0xf] %v396
        %v398 = vld [vmem:[#allocation3] sm:$0xf]
        %v399 = vmul.f32 %v390, %v390
        %v400 = vmul.f32 %v391, %v391
        %v401 = vsel %vm376, %v399, 0.0
        %v402 = vsel %vm376, %v400, 0.0
        %v403 = vadd.f32 %v401, %v402
        %v404 = vadd.f32 %v398, %v403
        %405 = vst [vmem:[#allocation3] sm:$0xf] %v404
        // Predicated region
        $region41: #{tpu_custom_call.1} parent=31 // pred_check
          _
        $region42: #{tpu_custom_call.1} parent=31 // pred_check_branch
          %407 = sbr.rel (%p367) target = $region44
        $region43: #{tpu_custom_call.1} parent=31 // pred_region
          %v408 = vld [vmem:[#allocation2] sm:$0xf]
          %v409 = vsel %vm376, %v408, 0.0
          %410 = vadd.xlane.f32.xlu0 %v409
          %v411 = vpop.xlane.xlu0 %410
          %v412 = vld [vmem:[#allocation3] sm:$0xf]
          %v413 = vsel %vm376, %v412, 0.0
          %414 = vadd.xlane.f32.xlu0 %v413
          %v415 = vpop.xlane.xlu0 %414
          %v416 = vrcp.pop 512.0
          %v417 = vmul.f32 %v411, %v416
          %v418 = vmul.f32 %v417, 512.0
          %v419 = vmul.f32 %v418, %v417
          %v420 = vsub.f32 %v415, %v419
          %v421 = vmax.f32 %v420, 0.0
          %v422 = vrcp.pop 511.0
          %v423 = vmul.f32 %v421, %v422
          %v424 = vrsqrt.pop %v423
          %v425 = vmul.f32 %v423, %v424
          %vm426 = vcmp.eq.f32.partialorder %v423, inf
          %v427 = vsel %vm426, %v423, %v425
          %vm428 = vcmp.eq.f32.partialorder %v423, 0.0
          %v429 = vand.u32 %v423, 2147483648
          %v430 = vsel %vm428, %v429, %v427
          %v431 = vld [vmem:[%s344] sm:$0xf]
          %v432 = vrcp.pop %v430
          %v433 = vmul.f32 %v431, %v432
          %v434 = vld [vmem:[%s348] sm:$0xf]
          %v435 = vmul.f32 %v417, %v433
          %v436 = vsub.f32 %v434, %v435
          %vm437 = vcmask 3072
          %438 = vst.msk [vmem:[%s360] sm:$0xf] %vm437, %v417
          %439 = vst.msk [vmem:[%s364] sm:$0xf] %vm437, %v430
          %440 = vst.msk [vmem:[%s352] sm:$0xf] %vm437, %v433
          %441 = vst.msk [vmem:[%s356] sm:$0xf] %vm437, %v436
        $region44: #{tpu_custom_call.1} parent=31 // pred_fallthru
          _
        %p442 = scmp.lt.s32.totalorder %s26, 1
        %s443 = scalar_select %p442, %s26, 1
        %s444 = smul.addr %s443, 4
        %s445 = scalar_lea.vmem %s3, %s444
        %p446 = scmp.lt.s32.totalorder %s26, 1
        %s447 = scalar_select %p446, %s26, 1
        %s448 = smul.addr %s447, 4
        %s449 = scalar_lea.vmem %s4, %s448
        %p450 = scmp.lt.s32.totalorder %s26, 1
        %s451 = scalar_select %p450, %s26, 1
        %s452 = smul.addr %s451, 4
        %s453 = scalar_lea.vmem %s5, %s452
        %p454 = scmp.lt.s32.totalorder %s26, 1
        %s455 = scalar_select %p454, %s26, 1
        %s456 = smul.addr %s455, 4
        %s457 = scalar_lea.vmem %s6, %s456
        // Predicated region
        $region45: #{tpu_custom_call.1} parent=31 // pred_check
          %p458 = pneg %p140
        $region46: #{tpu_custom_call.1} parent=31 // pred_check_branch
          %460 = sbr.rel (%p458) target = $region48
        $region47: #{tpu_custom_call.1} parent=31 // pred_region
          _
        $region48: #{tpu_custom_call.1} parent=31 // pred_fallthru
          _
        // Predicated region
        $region49: #{tpu_custom_call.1} parent=31 // pred_check
          %p461 = pneg %p166
        $region50: #{tpu_custom_call.1} parent=31 // pred_check_branch
          %463 = sbr.rel (%p461) target = $region52
        $region51: #{tpu_custom_call.1} parent=31 // pred_region
          _
        $region52: #{tpu_custom_call.1} parent=31 // pred_fallthru
          _
        // Predicated region
        $region53: #{tpu_custom_call.1} parent=31 // pred_check
          %p464 = pneg %p192
        $region54: #{tpu_custom_call.1} parent=31 // pred_check_branch
          %466 = sbr.rel (%p464) target = $region56
        $region55: #{tpu_custom_call.1} parent=31 // pred_region
          _
        $region56: #{tpu_custom_call.1} parent=31 // pred_fallthru
          _
        // Predicated region
        $region57: #{tpu_custom_call.1} parent=31 // pred_check
          %p467 = pneg %p218
        $region58: #{tpu_custom_call.1} parent=31 // pred_check_branch
          %469 = sbr.rel (%p467) target = $region60
        $region59: #{tpu_custom_call.1} parent=31 // pred_region
          _
        $region60: #{tpu_custom_call.1} parent=31 // pred_fallthru
          _
      $region32: #{tpu_custom_call.1} parent=5 // pred_fallthru
        _
      %p470 = scmp.le.s32.totalorder 2, %s16
      // Predicated region
      $region61: #{tpu_custom_call.1} parent=5 // pred_check
        %p471 = pneg %p470
      $region62: #{tpu_custom_call.1} parent=5 // pred_check_branch
        %473 = sbr.rel (%p471) target = $region64
      $region63: #{tpu_custom_call.1} parent=5 // pred_region
        %s474 = ssub.s32 %s16, 2
        // Predicated region
        $region65: #{tpu_custom_call.1} parent=63 // pred_check
          %p475 = pneg %p146
        $region66: #{tpu_custom_call.1} parent=63 // pred_check_branch
          %477 = sbr.rel (%p475) target = $region68
        $region67: #{tpu_custom_call.1} parent=63 // pred_region
          %p478 = scmp.lt.s32.totalorder %s29, 1
          %s479 = scalar_select %p478, %s29, 1
          %s480 = smul.addr %s479, 4
          %s481 = scalar_lea.vmem %s3, %s480
        $region68: #{tpu_custom_call.1} parent=63 // pred_fallthru
          _
        // Predicated region
        $region69: #{tpu_custom_call.1} parent=63 // pred_check
          %p482 = pneg %p172
        $region70: #{tpu_custom_call.1} parent=63 // pred_check_branch
          %484 = sbr.rel (%p482) target = $region72
        $region71: #{tpu_custom_call.1} parent=63 // pred_region
          %p485 = scmp.lt.s32.totalorder %s29, 1
          %s486 = scalar_select %p485, %s29, 1
          %s487 = smul.addr %s486, 4
          %s488 = scalar_lea.vmem %s4, %s487
        $region72: #{tpu_custom_call.1} parent=63 // pred_fallthru
          _
        // Predicated region
        $region73: #{tpu_custom_call.1} parent=63 // pred_check
          %p489 = pneg %p198
        $region74: #{tpu_custom_call.1} parent=63 // pred_check_branch
          %491 = sbr.rel (%p489) target = $region76
        $region75: #{tpu_custom_call.1} parent=63 // pred_region
          %p492 = scmp.lt.s32.totalorder %s29, 1
          %s493 = scalar_select %p492, %s29, 1
          %s494 = smul.addr %s493, 4
          %s495 = scalar_lea.vmem %s5, %s494
        $region76: #{tpu_custom_call.1} parent=63 // pred_fallthru
          _
        // Predicated region
        $region77: #{tpu_custom_call.1} parent=63 // pred_check
          %p496 = pneg %p224
        $region78: #{tpu_custom_call.1} parent=63 // pred_check_branch
          %498 = sbr.rel (%p496) target = $region80
        $region79: #{tpu_custom_call.1} parent=63 // pred_region
          %p499 = scmp.lt.s32.totalorder %s29, 1
          %s500 = scalar_select %p499, %s29, 1
          %s501 = smul.addr %s500, 4
          %s502 = scalar_lea.vmem %s6, %s501
        $region80: #{tpu_custom_call.1} parent=63 // pred_fallthru
          _
      $region64: #{tpu_custom_call.1} parent=5 // pred_fallthru
        _
    $region6: #{tpu_custom_call.1} parent=1 // loop_footer
      %s20 = sadd.s32 1, %s16
    $region7: #{tpu_custom_call.1} parent=1 // loop_footer_branch
      %15 = sbr.rel target = $region3
    $region8: #{tpu_custom_call.1} parent=1 // loop_exit
      _
    %503 = vsyncpa [#allocation5], 1
    %s504 = scalar_lea.sflag [#allocation5], 1
    %505 = vsyncpa %s504, 1

</llo_original>
